<compile_context>
chip_gen: v7x
topology: tpu7x:2x2x1
jax: 0.10.0
libtpu: 0.0.40
codegen_flags: <defaults>
</compile_context>

<pallas_src>
import jax
import jax.numpy as jnp
from jax import lax
from jax.experimental import pallas as pl
from jax.experimental.pallas import tpu as pltpu


def _round_up(x, m):
    return (x + m - 1) // m * m


# --------------------------------------------------------------------------
# Path 1 ("gather"): manual double-buffered DMA gather of R rows per grid step.
# Table stays in HBM; only the B needed rows are moved (B*H*4 bytes, not V*H*4).
# --------------------------------------------------------------------------
def _make_gather_kernel(rows_per_step):
    R = rows_per_step

    def kernel(labels_ref, table_hbm, out_ref, buf, sem):
        # labels_ref : SMEM (B_pad,) int32     (scalar prefetch)
        # table_hbm  : HBM  (V, H_pad)         (memory_space=pl.ANY, manual DMA)
        # out_ref    : VMEM (R, H_pad)         (Pallas-pipelined output block)
        # buf        : VMEM (2, R, H_pad)      (double buffer)
        # sem        : DMA  (2, R)
        i = pl.program_id(0)
        nsteps = pl.num_programs(0)

        def fetch(step, slot):
            # Issue R independent row DMAs; they stay in flight together.
            for r in range(R):
                lbl = labels_ref[step * R + r]
                pltpu.make_async_copy(
                    table_hbm.at[lbl], buf.at[slot, r], sem.at[slot, r]
                ).start()

        @pl.when(i == 0)
        def _():
            fetch(0, 0)

        # Prefetch the next step's rows while this step's block is consumed.
        @pl.when(i + 1 < nsteps)
        def _():
            fetch(i + 1, (i + 1) % 2)

        slot = i % 2
        for r in range(R):
            pltpu.make_async_copy(
                table_hbm.at[0], buf.at[slot, r], sem.at[slot, r]
            ).wait()
        out_ref[...] = buf[slot]

    return kernel


def _label_embed_gather(labels_i32, table_padded):
    B = int(labels_i32.shape[0])
    V, H_pad = table_padded.shape
    itemsize = jnp.dtype(table_padded.dtype).itemsize

    # 8..32 rows per grid step amortizes the ~0.35us/step overhead and keeps
    # several row DMAs in flight.
    R = 32 if B >= 32 else _round_up(max(B, 1), 8)
    B_pad = _round_up(B, R)
    if B_pad != B:
        labels_i32 = jnp.pad(labels_i32, (0, B_pad - B))  # padded rows fetch row 0
    nsteps = B_pad // R

    grid_spec = pltpu.PrefetchScalarGridSpec(
        num_scalar_prefetch=1,
        grid=(nsteps,),
        in_specs=[pl.BlockSpec(memory_space=pl.ANY)],  # table stays in HBM
        out_specs=pl.BlockSpec((R, H_pad), lambda i, lab: (i, 0)),
        scratch_shapes=[
            pltpu.VMEM((2, R, H_pad), table_padded.dtype),
            pltpu.SemaphoreType.DMA((2, R)),
        ],
    )
    out = pl.pallas_call(
        _make_gather_kernel(R),
        out_shape=jax.ShapeDtypeStruct((B_pad, H_pad), table_padded.dtype),
        grid_spec=grid_spec,
        compiler_params=pltpu.CompilerParams(
            # The cross-step prefetch chain (slot = i % 2, fetch of step i+1
            # issued at step i) requires sequential grid execution.
            dimension_semantics=("arbitrary",),
        ),
        cost_estimate=pl.CostEstimate(
            flops=0,
            transcendentals=0,
            bytes_accessed=2 * B_pad * H_pad * itemsize + B_pad * 4,
        ),
    )(labels_i32, table_padded)
    return out[:B]


# --------------------------------------------------------------------------
# Path 2 ("select"): tiny-table fallback.  Table resident in VMEM (one DMA),
# per-row dynamic select -- pure VMEM copies, no one-hot, no MXU.
# --------------------------------------------------------------------------
def _make_select_kernel(tb):
    def kernel(labels_ref, table_ref, out_ref):
        # labels_ref : SMEM (B_pad,) int32   (scalar prefetch)
        # table_ref  : VMEM (V, H_pad)       (resident: constant index_map)
        # out_ref    : VMEM (tb, H_pad)
        base = pl.program_id(0) * tb
        for r in range(tb):
            lbl = labels_ref[base + r]
            out_ref[pl.ds(r, 1), :] = table_ref[pl.ds(lbl, 1), :]

    return kernel


def _label_embed_select(labels_i32, table_padded):
    B = int(labels_i32.shape[0])
    V, H_pad = table_padded.shape
    itemsize = jnp.dtype(table_padded.dtype).itemsize

    tb = min(64, _round_up(max(B, 1), 8))
    B_pad = _round_up(B, tb)
    if B_pad != B:
        labels_i32 = jnp.pad(labels_i32, (0, B_pad - B))

    grid_spec = pltpu.PrefetchScalarGridSpec(
        num_scalar_prefetch=1,
        grid=(B_pad // tb,),
        # Full-array block along V (allowed: equals full dim); H_pad is 128-mult.
        in_specs=[pl.BlockSpec((V, H_pad), lambda i, lab: (0, 0))],
        out_specs=pl.BlockSpec((tb, H_pad), lambda i, lab: (i, 0)),
    )
    out = pl.pallas_call(
        _make_select_kernel(tb),
        out_shape=jax.ShapeDtypeStruct((B_pad, H_pad), table_padded.dtype),
        grid_spec=grid_spec,
        compiler_params=pltpu.CompilerParams(
            dimension_semantics=("parallel",),
        ),
        cost_estimate=pl.CostEstimate(
            flops=0,
            transcendentals=0,
            bytes_accessed=(V * H_pad + 2 * B_pad * H_pad) * itemsize + B_pad * 4,
        ),
    )(labels_i32, table_padded)
    return out[:B]


# --------------------------------------------------------------------------
# Wrapper: token-drop stays in plain JAX; path select; slice padding off.
# --------------------------------------------------------------------------
def label_embed_pallas(dropped_labels, table, *, out_dim=None, path=None):
    """out[i] = table[dropped_labels[i]] via a Pallas TPU kernel.

    `table` should already have its hidden dim padded to a multiple of 128
    (done once at LabelEmbedder.__init__); if it is not, it is padded here,
    which rewrites the whole table in HBM -- avoid on a hot path.
    """
    V, H = table.shape
    out_dim = H if out_dim is None else out_dim
    itemsize = jnp.dtype(table.dtype).itemsize

    H_pad = _round_up(H, 128)
    if H_pad != H:
        table = jnp.pad(table, ((0, 0), (0, H_pad - H)))

    if path is None:
        # Tiny tables: one resident-table DMA + in-kernel select beats per-row
        # HBM DMAs; otherwise DMA only the B needed rows.
        path = "gather" if V * H_pad * itemsize > (1 << 20) else "select"

    # Clamp to a valid row to keep the data-dependent DMA in bounds.
    # TODO(synk): PyTorch's nn.Embedding raises on out-of-range labels (e.g. a
    # forced drop when dropout_prob == 0); here they are clamped instead.
    labels_i32 = jnp.clip(dropped_labels.astype(jnp.int32), 0, V - 1)

    if path == "gather":
        out = _label_embed_gather(labels_i32, table)
    elif path == "select":
        out = _label_embed_select(labels_i32, table)
    else:
        raise ValueError(f"unknown path: {path!r}")

    return out[:, :out_dim] if out_dim != H_pad else out


class LabelEmbedder:
    """JAX/Pallas port of the PyTorch LabelEmbedder module."""

    def __init__(self, num_classes, hidden_size, dropout_prob, *, key):
        use_cfg_embedding = 1 if dropout_prob > 0 else 0
        # nn.Embedding default init ~ N(0, 1); deterministic synthetic init here.
        self.embedding_table = jax.random.normal(
            key, (num_classes + use_cfg_embedding, hidden_size), dtype=jnp.float32
        )
        self.num_classes = num_classes
        self.hidden_size = hidden_size
        self.dropout_prob = dropout_prob
        # Pad the hidden dim to a lane multiple ONCE (lane-dense, unmasked
        # stores in the kernels); forward never pays a full-table rewrite.
        h_pad = _round_up(hidden_size, 128)
        if h_pad != hidden_size:
            self._table_padded = jnp.pad(
                self.embedding_table, ((0, 0), (0, h_pad - hidden_size))
            )
        else:
            self._table_padded = self.embedding_table

    def token_drop(self, labels, force_drop_ids=None, key=None):
        if force_drop_ids is None:
            drop_ids = jax.random.uniform(key, (labels.shape[0],)) < self.dropout_prob
        else:
            drop_ids = force_drop_ids == 1
        return jnp.where(drop_ids, self.num_classes, labels)

    def forward(self, labels, train, force_drop_ids=None, key=None, path=None):
        use_dropout = self.dropout_prob > 0
        if (train and use_dropout) or (force_drop_ids is not None):
            labels = self.token_drop(labels, force_drop_ids, key)
        return label_embed_pallas(
            labels, self._table_padded, out_dim=self.hidden_size, path=path
        )


if __name__ == "__main__":
    num_classes = 10
    hidden_size = 32
    dropout_prob = 0.1
    batch = 8

    root = jax.random.PRNGKey(0)
    k_table, k_labels, k_drop = jax.random.split(root, 3)

    embedder = LabelEmbedder(num_classes, hidden_size, dropout_prob, key=k_table)
    labels = jax.random.randint(k_labels, (batch,), 0, num_classes, dtype=jnp.int32)
    force_drop_ids = jnp.array([1, 0, 0, 1, 0, 0, 0, 1], dtype=jnp.int32)

    # Pure-JAX references.
    dropped = jnp.where(force_drop_ids == 1, num_classes, labels)
    ref_forced = jnp.take(embedder.embedding_table, dropped, axis=0)
    ref_eval = jnp.take(embedder.embedding_table, labels, axis=0)

    # Exercise both kernel paths (the tiny demo table auto-selects "select").
    out_forced_sel = embedder.forward(
        labels, train=True, force_drop_ids=force_drop_ids, path="select"
    )
    out_forced_ga = embedder.forward(
        labels, train=True, force_drop_ids=force_drop_ids, path="gather"
    )
    out_eval = embedder.forward(labels, train=False)
    out_train = embedder.forward(labels, train=True, key=k_drop)  # random CFG drop

    jax.block_until_ready((out_forced_sel, out_forced_ga, out_eval, out_train))

    assert out_forced_sel.shape == (batch, hidden_size)
    assert out_forced_ga.shape == (batch, hidden_size)
    assert jnp.allclose(out_forced_sel, ref_forced, atol=1e-5)
    assert jnp.allclose(out_forced_ga, ref_forced, atol=1e-5)
    assert jnp.allclose(out_eval, ref_eval, atol=1e-5)
    # Randomly-dropped rows must equal either the label's row or the CFG null row.
    cfg_row = embedder.embedding_table[num_classes][None, :]
    is_label = jnp.all(jnp.isclose(out_train, ref_eval, atol=1e-5), axis=-1)
    is_null = jnp.all(jnp.isclose(out_train, cfg_row, atol=1e-5), axis=-1)
    assert bool(jnp.all(is_label | is_null))

    print("KERNEL_OK")
</pallas_src>

<mosaic_0001>
module attributes {stable_mosaic.version = 11 : i64} {
  func.func @kernel(%arg0: i32, %arg1: memref<8xi32, #tpu.memory_space<smem>>, %arg2: memref<11x128xf32, #tpu.memory_space<vmem>>, %arg3: memref<8x128xf32, #tpu.memory_space<vmem>>) attributes {dimension_semantics = [#tpu.dimension_semantics<parallel>], iteration_bounds = array<i64: 1>, scalar_prefetch = 1 : i64, scratch_operands = 0 : i64, tpu.core_type = #tpu.core_type<tc>, window_params = [{pipeline_mode = #tpu.pipeline_mode<synchronous>, transform_indices = @transform_0, window_bounds = array<i64: 11, 128>}, {transform_indices = @transform_1, window_bounds = array<i64: 8, 128>}]} {
    %c8_i32 = arith.constant 8 : i32
    %0 = arith.muli %arg0, %c8_i32 : i32
    %c0_i32 = arith.constant 0 : i32
    %1 = arith.addi %0, %c0_i32 : i32
    %2 = arith.index_cast %1 : i32 to index
    %3 = memref.load %arg1[%2] : memref<8xi32, #tpu.memory_space<smem>>
    %4 = arith.index_cast %3 : i32 to index
    %c0 = arith.constant 0 : index
    %5 = vector.load %arg2[%4, %c0] : memref<11x128xf32, #tpu.memory_space<vmem>>, vector<1x128xf32>
    %c0_0 = arith.constant 0 : index
    %c0_1 = arith.constant 0 : index
    %6 = vector.load %arg3[%c0_0, %c0_1] : memref<8x128xf32, #tpu.memory_space<vmem>>, vector<1x128xf32>
    tpu.vector_store %arg3[%c0_0, %c0_1], %5 {strides = array<i32>} : memref<8x128xf32, #tpu.memory_space<vmem>>, vector<1x128xf32>,
    %c1_i32 = arith.constant 1 : i32
    %7 = arith.addi %0, %c1_i32 : i32
    %8 = arith.index_cast %7 : i32 to index
    %9 = memref.load %arg1[%8] : memref<8xi32, #tpu.memory_space<smem>>
    %10 = arith.index_cast %9 : i32 to index
    %c0_2 = arith.constant 0 : index
    %11 = vector.load %arg2[%10, %c0_2] : memref<11x128xf32, #tpu.memory_space<vmem>>, vector<1x128xf32>
    %c1 = arith.constant 1 : index
    %c0_3 = arith.constant 0 : index
    %12 = vector.load %arg3[%c1, %c0_3] : memref<8x128xf32, #tpu.memory_space<vmem>>, vector<1x128xf32>
    tpu.vector_store %arg3[%c1, %c0_3], %11 {strides = array<i32>} : memref<8x128xf32, #tpu.memory_space<vmem>>, vector<1x128xf32>,
    %c2_i32 = arith.constant 2 : i32
    %13 = arith.addi %0, %c2_i32 : i32
    %14 = arith.index_cast %13 : i32 to index
    %15 = memref.load %arg1[%14] : memref<8xi32, #tpu.memory_space<smem>>
    %16 = arith.index_cast %15 : i32 to index
    %c0_4 = arith.constant 0 : index
    %17 = vector.load %arg2[%16, %c0_4] : memref<11x128xf32, #tpu.memory_space<vmem>>, vector<1x128xf32>
    %c2 = arith.constant 2 : index
    %c0_5 = arith.constant 0 : index
    %18 = vector.load %arg3[%c2, %c0_5] : memref<8x128xf32, #tpu.memory_space<vmem>>, vector<1x128xf32>
    tpu.vector_store %arg3[%c2, %c0_5], %17 {strides = array<i32>} : memref<8x128xf32, #tpu.memory_space<vmem>>, vector<1x128xf32>,
    %c3_i32 = arith.constant 3 : i32
    %19 = arith.addi %0, %c3_i32 : i32
    %20 = arith.index_cast %19 : i32 to index
    %21 = memref.load %arg1[%20] : memref<8xi32, #tpu.memory_space<smem>>
    %22 = arith.index_cast %21 : i32 to index
    %c0_6 = arith.constant 0 : index
    %23 = vector.load %arg2[%22, %c0_6] : memref<11x128xf32, #tpu.memory_space<vmem>>, vector<1x128xf32>
    %c3 = arith.constant 3 : index
    %c0_7 = arith.constant 0 : index
    %24 = vector.load %arg3[%c3, %c0_7] : memref<8x128xf32, #tpu.memory_space<vmem>>, vector<1x128xf32>
    tpu.vector_store %arg3[%c3, %c0_7], %23 {strides = array<i32>} : memref<8x128xf32, #tpu.memory_space<vmem>>, vector<1x128xf32>,
    %c4_i32 = arith.constant 4 : i32
    %25 = arith.addi %0, %c4_i32 : i32
    %26 = arith.index_cast %25 : i32 to index
    %27 = memref.load %arg1[%26] : memref<8xi32, #tpu.memory_space<smem>>
    %28 = arith.index_cast %27 : i32 to index
    %c0_8 = arith.constant 0 : index
    %29 = vector.load %arg2[%28, %c0_8] : memref<11x128xf32, #tpu.memory_space<vmem>>, vector<1x128xf32>
    %c4 = arith.constant 4 : index
    %c0_9 = arith.constant 0 : index
    %30 = vector.load %arg3[%c4, %c0_9] : memref<8x128xf32, #tpu.memory_space<vmem>>, vector<1x128xf32>
    tpu.vector_store %arg3[%c4, %c0_9], %29 {strides = array<i32>} : memref<8x128xf32, #tpu.memory_space<vmem>>, vector<1x128xf32>,
    %c5_i32 = arith.constant 5 : i32
    %31 = arith.addi %0, %c5_i32 : i32
    %32 = arith.index_cast %31 : i32 to index
    %33 = memref.load %arg1[%32] : memref<8xi32, #tpu.memory_space<smem>>
    %34 = arith.index_cast %33 : i32 to index
    %c0_10 = arith.constant 0 : index
    %35 = vector.load %arg2[%34, %c0_10] : memref<11x128xf32, #tpu.memory_space<vmem>>, vector<1x128xf32>
    %c5 = arith.constant 5 : index
    %c0_11 = arith.constant 0 : index
    %36 = vector.load %arg3[%c5, %c0_11] : memref<8x128xf32, #tpu.memory_space<vmem>>, vector<1x128xf32>
    tpu.vector_store %arg3[%c5, %c0_11], %35 {strides = array<i32>} : memref<8x128xf32, #tpu.memory_space<vmem>>, vector<1x128xf32>,
    %c6_i32 = arith.constant 6 : i32
    %37 = arith.addi %0, %c6_i32 : i32
    %38 = arith.index_cast %37 : i32 to index
    %39 = memref.load %arg1[%38] : memref<8xi32, #tpu.memory_space<smem>>
    %40 = arith.index_cast %39 : i32 to index
    %c0_12 = arith.constant 0 : index
    %41 = vector.load %arg2[%40, %c0_12] : memref<11x128xf32, #tpu.memory_space<vmem>>, vector<1x128xf32>
    %c6 = arith.constant 6 : index
    %c0_13 = arith.constant 0 : index
    %42 = vector.load %arg3[%c6, %c0_13] : memref<8x128xf32, #tpu.memory_space<vmem>>, vector<1x128xf32>
    tpu.vector_store %arg3[%c6, %c0_13], %41 {strides = array<i32>} : memref<8x128xf32, #tpu.memory_space<vmem>>, vector<1x128xf32>,
    %c7_i32 = arith.constant 7 : i32
    %43 = arith.addi %0, %c7_i32 : i32
    %44 = arith.index_cast %43 : i32 to index
    %45 = memref.load %arg1[%44] : memref<8xi32, #tpu.memory_space<smem>>
    %46 = arith.index_cast %45 : i32 to index
    %c0_14 = arith.constant 0 : index
    %47 = vector.load %arg2[%46, %c0_14] : memref<11x128xf32, #tpu.memory_space<vmem>>, vector<1x128xf32>
    %c7 = arith.constant 7 : index
    %c0_15 = arith.constant 0 : index
    %48 = vector.load %arg3[%c7, %c0_15] : memref<8x128xf32, #tpu.memory_space<vmem>>, vector<1x128xf32>
    tpu.vector_store %arg3[%c7, %c0_15], %47 {strides = array<i32>} : memref<8x128xf32, #tpu.memory_space<vmem>>, vector<1x128xf32>,
    return
  }
  func.func @transform_0(%arg0: i32, %arg1: memref<8xi32, #tpu.memory_space<smem>>) -> (i32, i32) {
    %c0_i32 = arith.constant 0 : i32
    %c0_i32_0 = arith.constant 0 : i32
    %c0_i32_1 = arith.constant 0 : i32
    return %c0_i32, %c0_i32_0 : i32, i32
  }
  func.func @transform_1(%arg0: i32, %arg1: memref<8xi32, #tpu.memory_space<smem>>) -> (i32, i32) {
    %c0_i32 = arith.constant 0 : i32
    %c0_i32_0 = arith.constant 0 : i32
    return %arg0, %c0_i32 : i32, i32
  }
}

</mosaic_0001>

<llo_original>
// kernel: tpu_custom_call.1
$region0: #{tpu_custom_call.1}
  #allocation0 [shape = 'u32[]', space=smem, size = 0x4, offset = 0x4, fixed_abs, tag = 'smem constant byte address 0x4 - core index']
  #allocation1 [shape = 'u32[144,128]{1,0:T(1,128)}', space=vmem, size = 0x12000, scoped, tag = 'internal scratch']
  #allocation2 [shape = 's32[1]{0}', space=sflag, size = 0x4, scoped, tag = 'scoped memory for tpu_custom_call.1']
  #allocation3 [shape = 'u8[512]{0}', space=smem, size = 0x200, scoped, tag = 'prefetched SMEM operand 0']
  %s0 = inlined_call_operand.hbm [shape: s32[8], index: 0, kind: input, shape index: {}]
  %s1 = inlined_call_operand.hbm [shape: f32[11,128], index: 1, kind: input, shape index: {}]
  %s2 = inlined_call_operand.hbm [shape: f32[8,128], index: 2, kind: output, shape index: {}]
  %s3 = sld [smem:[#allocation0]]
  $region18: #{tpu_custom_call.1} parent=0
    _
  %s5 = ssub.s32 1, %s3
  %s6 = scalar_select 0, %s5, %s3
  %8 = dma.hbm_to_smem %s0, 16, [#allocation3], [#allocation2]
  %9 = dma.done [#allocation2], 16
  %10 = sfence
  $region1: #{tpu_custom_call.1} parent=0
    #allocation4 [shape = 'u8[8192]{0}', space=vmem, size = 0x2000, scoped, tag = 'input window, operand 1, single buffered']
    #allocation5 [shape = 's32[1]{0}', space=sflag, size = 0x4, scoped, tag = 'scoped memory for tpu_custom_call.1']
    #allocation6 [shape = 's32[1]{0}', space=sflag, size = 0x4, scoped, tag = 'scoped memory for tpu_custom_call.1']
    #allocation7 [shape = 'u8[4096]{0}', space=vmem, size = 0x1000, scoped, tag = 'output window, operand 0, single buffered']
    %11 = vsyncpa [#allocation5], 0
    %12 = vsyncpa [#allocation6], 0
    // Predicated region
    $region2: #{tpu_custom_call.1} parent=1 // pred_check
      _
    $region3: #{tpu_custom_call.1} parent=1 // pred_check_branch
      %14 = sbr.rel (0) target = $region5
    $region4: #{tpu_custom_call.1} parent=1 // pred_region
      %s16 = ssub.s32 256, 256
      %17 = vsyncadd [#allocation5], %s16
      %s18 = sshll.u32 [#allocation4], 4
      %s19 = int_to_ptr.vmem [resolvable:$true] %s18
      %24 = dma.hbm_to_vmem [thread:$0]  %s1, 256, %s19, [#allocation5], 128, 128, 8
    $region5: #{tpu_custom_call.1} parent=1 // pred_fallthru
      _
    // Predicated region
    $region6: #{tpu_custom_call.1} parent=1 // pred_check
      _
    $region7: #{tpu_custom_call.1} parent=1 // pred_check_branch
      %26 = sbr.rel (0) target = $region9
    $region8: #{tpu_custom_call.1} parent=1 // pred_region
      %27 = dma.done [#allocation5], 256
    $region9: #{tpu_custom_call.1} parent=1 // pred_fallthru
      _
    %s28 = smul.u32 0, 8
    %s29 = sld [smem:[#allocation3 + %s28]]
    %s30 = scalar_lea.vmem [#allocation4], %s29
    %v31 = vld [vmem:[%s30] sm:$0x1]
    %32 = vst [vmem:[#allocation7] sm:$0x1] %v31
    %s33 = sadd.s32 %s28, 1
    %s34 = sld [smem:[#allocation3 + %s33]]
    %s35 = scalar_lea.vmem [#allocation4], %s34
    %v36 = vld [vmem:[%s35] sm:$0x1]
    %37 = vst [vmem:[#allocation7 + $0x1] sm:$0x1] %v36
    %s38 = sadd.s32 %s28, 2
    %s39 = sld [smem:[#allocation3 + %s38]]
    %s40 = scalar_lea.vmem [#allocation4], %s39
    %v41 = vld [vmem:[%s40] sm:$0x1]
    %42 = vst [vmem:[#allocation7 + $0x2] sm:$0x1] %v41
    %s43 = sadd.s32 %s28, 3
    %s44 = sld [smem:[#allocation3 + %s43]]
    %s45 = scalar_lea.vmem [#allocation4], %s44
    %v46 = vld [vmem:[%s45] sm:$0x1]
    %47 = vst [vmem:[#allocation7 + $0x3] sm:$0x1] %v46
    %s48 = sadd.s32 %s28, 4
    %s49 = sld [smem:[#allocation3 + %s48]]
    %s50 = scalar_lea.vmem [#allocation4], %s49
    %v51 = vld [vmem:[%s50] sm:$0x1]
    %52 = vst [vmem:[#allocation7 + $0x4] sm:$0x1] %v51
    %s53 = sadd.s32 %s28, 5
    %s54 = sld [smem:[#allocation3 + %s53]]
    %s55 = scalar_lea.vmem [#allocation4], %s54
    %v56 = vld [vmem:[%s55] sm:$0x1]
    %57 = vst [vmem:[#allocation7 + $0x5] sm:$0x1] %v56
    %s58 = sadd.s32 %s28, 6
    %s59 = sld [smem:[#allocation3 + %s58]]
    %s60 = scalar_lea.vmem [#allocation4], %s59
    %v61 = vld [vmem:[%s60] sm:$0x1]
    %62 = vst [vmem:[#allocation7 + $0x6] sm:$0x1] %v61
    %s63 = sadd.s32 %s28, 7
    %s64 = sld [smem:[#allocation3 + %s63]]
    %s65 = scalar_lea.vmem [#allocation4], %s64
    %v66 = vld [vmem:[%s65] sm:$0x1]
    %67 = vst [vmem:[#allocation7 + $0x7] sm:$0x1] %v66
    // Predicated region
    $region10: #{tpu_custom_call.1} parent=1 // pred_check
      _
    $region11: #{tpu_custom_call.1} parent=1 // pred_check_branch
      %69 = sbr.rel (0) target = $region13
    $region12: #{tpu_custom_call.1} parent=1 // pred_region
      %s71 = ssub.s32 128, 128
      %72 = vsyncadd [#allocation6], %s71
      %s74 = sshll.u32 [#allocation7], 4
      %s75 = int_to_ptr.vmem [resolvable:$true] %s74
      %77 = dma.vmem_to_hbm [thread:$0]  %s75, 128, %s2, [#allocation6]
    $region13: #{tpu_custom_call.1} parent=1 // pred_fallthru
      _
    // Predicated region
    $region14: #{tpu_custom_call.1} parent=1 // pred_check
      _
    $region15: #{tpu_custom_call.1} parent=1 // pred_check_branch
      %79 = sbr.rel (0) target = $region17
    $region16: #{tpu_custom_call.1} parent=1 // pred_region
      %80 = dma.done [#allocation6], 128
    $region17: #{tpu_custom_call.1} parent=1 // pred_fallthru
      _
    %81 = vsyncpa [#allocation5], 1
    %82 = vsyncpa [#allocation6], 1

</llo_original>
